<compile_context>
chip_gen: v5e
topology: v5e:2x2
jax: 0.10.0
libtpu: 0.0.40
codegen_flags: <defaults>
</compile_context>

<pallas_src>
import functools

import jax
import jax.numpy as jnp
from jax.experimental import pallas as pl
from jax.experimental.pallas import tpu as pltpu

EPS = 1e-5


def _round_up(x, m):
    return (x + m - 1) // m * m


def _vmem_capacity_bytes():
    """Per-core VMEM capacity, with conservative fallbacks."""
    try:
        cap = int(getattr(pltpu.get_tpu_info(), "vmem_capacity_bytes", 0))
        if cap > 0:
            return cap
    except Exception:
        pass
    try:
        kind = jax.devices()[0].device_kind.lower()
    except Exception:
        kind = ""
    if "v7" in kind:
        return 64 * 1024 * 1024
    return 128 * 1024 * 1024


VMEM_LIMIT = min(int(_vmem_capacity_bytes() * 3 // 4), 100 * 1024 * 1024)


def _pick_tile_s(S, K_pad, Cout_pad, vmem_limit):
    """Largest spatial tile (multiple of 128) whose working set fits VMEM."""
    budget = int(vmem_limit * 0.6)          # headroom for compiler scratch
    t = min(2048, _round_up(S, 128))
    while t > 128:
        # pass 1: double-buffered bf16 patches + bf16 weights + bf16 conv tile
        p1 = (2 * t * K_pad * 2 + 2 * K_pad * Cout_pad * 2
              + 2 * t * Cout_pad * 2 + 16 * Cout_pad * 4)
        # pass 2: bf16 conv in + f32 transposed out
        p2 = 2 * t * Cout_pad * 2 + 2 * Cout_pad * t * 4 + 8 * Cout_pad * 4
        if max(p1, p2) <= budget:
            break
        t -= 128
    return max(t, 128)


def conv_stats_kernel(p_ref, w_ref, b_ref, conv_ref, psum_ref, psumsq_ref,
                      *, valid_last, needs_mask):
    """Pass 1: conv tile (bf16 store) + per-tile channel sum / sumsq (f32)."""
    j = pl.program_id(1)
    n_j = pl.num_programs(1)

    # bf16 x bf16 -> f32 accumulation on the MXU, bias added in f32.
    conv = jnp.dot(p_ref[0], w_ref[...],
                   preferred_element_type=jnp.float32) + b_ref[...]
    conv_ref[0] = conv.astype(conv_ref.dtype)

    if needs_mask:
        # Padded spatial rows only exist in the last spatial tile: pay the
        # iota/compare/select only there.
        @pl.when(j == n_j - 1)
        def _():
            rows = jax.lax.broadcasted_iota(jnp.int32, conv.shape, 0)
            c = jnp.where(rows < valid_last, conv, 0.0)
            psum_ref[0, 0] = jnp.sum(c, axis=0, keepdims=True)
            psumsq_ref[0, 0] = jnp.sum(c * c, axis=0, keepdims=True)

        @pl.when(j != n_j - 1)
        def _():
            psum_ref[0, 0] = jnp.sum(conv, axis=0, keepdims=True)
            psumsq_ref[0, 0] = jnp.sum(conv * conv, axis=0, keepdims=True)
    else:
        psum_ref[0, 0] = jnp.sum(conv, axis=0, keepdims=True)
        psumsq_ref[0, 0] = jnp.sum(conv * conv, axis=0, keepdims=True)


def bn_relu_transpose_kernel(conv_ref, scale_ref, shift_ref, o_ref):
    """Pass 2: y = relu(conv*scale + shift), transposed tile (channel-major)."""
    y = conv_ref[0].astype(jnp.float32) * scale_ref[...] + shift_ref[...]
    y = jnp.maximum(y, 0.0)
    o_ref[0] = y.T                       # XLU transpose; pass is mem-bound


def im2col_s2_k3_p1(x):
    """x: [N, Cin, H, W] -> patches [N, Ho*Wo, Cin*9] (same dtype), (Ho, Wo)."""
    N, C, H, W = x.shape
    Ho = (H + 2 - 3) // 2 + 1
    Wo = (W + 2 - 3) // 2 + 1
    xp = jnp.pad(x, ((0, 0), (0, 0), (1, 1), (1, 1)))
    cols = []
    for kh in range(3):
        for kw in range(3):
            cols.append(xp[:, :, kh:kh + 2 * Ho:2, kw:kw + 2 * Wo:2])
    # [9, N, C, Ho, Wo] -> [N, Ho, Wo, C, 9] -> [N, Ho*Wo, C*9]
    # (feature order c*9 + kh*3 + kw matches torch's (Cin, kh, kw) flatten).
    p = jnp.stack(cols, axis=0)
    p = jnp.transpose(p, (1, 3, 4, 2, 0))
    return p.reshape(N, Ho * Wo, C * 9), Ho, Wo


def downsample_forward(x, conv_w, conv_b, bn_gamma, bn_beta):
    """x: [N, Cin, H, W] (NCHW). Returns [N, Cout, Ho, Wo] (NCHW), f32."""
    N, Cin, H, W = x.shape
    Cout = conv_w.shape[0]
    K = Cin * 9

    # im2col in bf16 (cast BEFORE the pad/stack/transpose glue).
    patches, Ho, Wo = im2col_s2_k3_p1(x.astype(jnp.bfloat16))
    S = Ho * Wo
    M = N * S                                   # true per-channel count

    K_pad = _round_up(K, 128)
    Cout_pad = _round_up(Cout, 128)
    tile_s = _pick_tile_s(S, K_pad, Cout_pad, VMEM_LIMIT)
    S_pad = _round_up(S, tile_s)
    n_j = S_pad // tile_s

    patches_p = jnp.pad(patches, ((0, 0), (0, S_pad - S), (0, K_pad - K)))
    w2d = jnp.pad(conv_w.astype(jnp.float32).reshape(Cout, K).T,
                  ((0, K_pad - K), (0, Cout_pad - Cout))).astype(jnp.bfloat16)
    b2d = jnp.pad(conv_b.astype(jnp.float32),
                  (0, Cout_pad - Cout)).reshape(1, Cout_pad)

    kernel1 = functools.partial(conv_stats_kernel,
                                valid_last=S - (n_j - 1) * tile_s,
                                needs_mask=(S_pad != S))

    conv_out, psum, psumsq = pl.pallas_call(
        kernel1,
        out_shape=(
            jax.ShapeDtypeStruct((N, S_pad, Cout_pad), jnp.bfloat16),
            jax.ShapeDtypeStruct((N, n_j, 1, Cout_pad), jnp.float32),
            jax.ShapeDtypeStruct((N, n_j, 1, Cout_pad), jnp.float32),
        ),
        grid=(N, n_j),
        in_specs=[
            pl.BlockSpec((1, tile_s, K_pad), lambda n, j: (n, j, 0)),
            pl.BlockSpec((K_pad, Cout_pad), lambda n, j: (0, 0)),
            pl.BlockSpec((1, Cout_pad), lambda n, j: (0, 0)),
        ],
        out_specs=(
            pl.BlockSpec((1, tile_s, Cout_pad), lambda n, j: (n, j, 0)),
            pl.BlockSpec((1, 1, 1, Cout_pad), lambda n, j: (n, j, 0, 0)),
            pl.BlockSpec((1, 1, 1, Cout_pad), lambda n, j: (n, j, 0, 0)),
        ),
        compiler_params=pltpu.CompilerParams(
            dimension_semantics=("parallel", "parallel"),
            vmem_limit_bytes=VMEM_LIMIT),
        cost_estimate=pl.CostEstimate(
            flops=2 * N * S_pad * K_pad * Cout_pad,
            transcendentals=0,
            bytes_accessed=(N * S_pad * K_pad * 2 + K_pad * Cout_pad * 2
                            + N * S_pad * Cout_pad * 2)),
    )(patches_p, w2d, b2d)

    # Tiny finalize (grid-steps x Cout_pad) in plain JAX: biased batch var.
    total_sum = jnp.sum(psum, axis=(0, 1, 2))
    total_sq = jnp.sum(psumsq, axis=(0, 1, 2))
    mean = total_sum / M
    var = jnp.maximum(total_sq / M - mean * mean, 0.0)
    inv_std = jax.lax.rsqrt(var + EPS)
    gamma_p = jnp.pad(bn_gamma.astype(jnp.float32), (0, Cout_pad - Cout))
    beta_p = jnp.pad(bn_beta.astype(jnp.float32), (0, Cout_pad - Cout))
    scale = (gamma_p * inv_std).reshape(1, Cout_pad)
    shift = (beta_p - mean * gamma_p * inv_std).reshape(1, Cout_pad)

    out3 = pl.pallas_call(
        bn_relu_transpose_kernel,
        out_shape=jax.ShapeDtypeStruct((N, Cout_pad, S_pad), jnp.float32),
        grid=(N, n_j),
        in_specs=[
            pl.BlockSpec((1, tile_s, Cout_pad), lambda n, j: (n, j, 0)),
            pl.BlockSpec((1, Cout_pad), lambda n, j: (0, 0)),
            pl.BlockSpec((1, Cout_pad), lambda n, j: (0, 0)),
        ],
        out_specs=pl.BlockSpec((1, Cout_pad, tile_s), lambda n, j: (n, 0, j)),
        compiler_params=pltpu.CompilerParams(
            dimension_semantics=("parallel", "parallel"),
            vmem_limit_bytes=VMEM_LIMIT),
    )(conv_out, scale, shift)

    # Channel-major buffer already: NCHW is just slice + reshape (no transpose).
    return out3[:, :Cout, :S].reshape(N, Cout, Ho, Wo)


def _reference(x, w, b, gamma, beta):
    y = jax.lax.conv_general_dilated(
        x.astype(jnp.float32), w.astype(jnp.float32),
        window_strides=(2, 2), padding=((1, 1), (1, 1)),
        dimension_numbers=("NCHW", "OIHW", "NCHW"))
    y = y + b.reshape(1, -1, 1, 1)
    mean = jnp.mean(y, axis=(0, 2, 3), keepdims=True)
    var = jnp.var(y, axis=(0, 2, 3), keepdims=True)
    y = (y - mean) * jax.lax.rsqrt(var + EPS)
    y = y * gamma.reshape(1, -1, 1, 1) + beta.reshape(1, -1, 1, 1)
    return jnp.maximum(y, 0.0)


if __name__ == "__main__":
    key = jax.random.PRNGKey(0)
    N, Cin, H, W = 2, 4, 16, 16
    Cout = 8

    k1, k2, k3 = jax.random.split(key, 3)
    x = jax.random.normal(k1, (N, Cin, H, W), dtype=jnp.float32)
    conv_w = jax.random.normal(k2, (Cout, Cin, 3, 3), dtype=jnp.float32) * 0.1
    conv_b = jax.random.normal(k3, (Cout,), dtype=jnp.float32) * 0.1
    bn_gamma = jnp.ones((Cout,), dtype=jnp.float32)
    bn_beta = jnp.zeros((Cout,), dtype=jnp.float32)

    y = jax.jit(downsample_forward)(x, conv_w, conv_b, bn_gamma, bn_beta)
    jax.block_until_ready(y)
    assert y.shape == (N, Cout, H // 2, W // 2), y.shape

    y_ref = _reference(x, conv_w, conv_b, bn_gamma, bn_beta)
    max_err = float(jnp.max(jnp.abs(y - y_ref)))
    assert jnp.allclose(y, y_ref, atol=5e-2, rtol=5e-2), max_err
    print("KERNEL_OK")
</pallas_src>

<mosaic_0001>
module attributes {stable_mosaic.version = 11 : i64} {
  func.func @conv_stats_kernel(%arg0: i32, %arg1: i32, %arg2: memref<1x128x128xbf16, #tpu.memory_space<vmem>>, %arg3: memref<128x128xbf16, #tpu.memory_space<vmem>>, %arg4: memref<1x128xf32, #tpu.memory_space<vmem>>, %arg5: memref<1x128x128xbf16, #tpu.memory_space<vmem>>, %arg6: memref<1x1x1x128xf32, #tpu.memory_space<vmem>>, %arg7: memref<1x1x1x128xf32, #tpu.memory_space<vmem>>) attributes {dimension_semantics = [#tpu.dimension_semantics<parallel>, #tpu.dimension_semantics<parallel>], iteration_bounds = array<i64: 2, 1>, scalar_prefetch = 0 : i64, scratch_operands = 0 : i64, tpu.core_type = #tpu.core_type<tc>, window_params = [{transform_indices = @transform_0, window_bounds = array<i64: 1, 128, 128>}, {pipeline_mode = #tpu.pipeline_mode<synchronous>, transform_indices = @transform_1, window_bounds = array<i64: 128, 128>}, {pipeline_mode = #tpu.pipeline_mode<synchronous>, transform_indices = @transform_2, window_bounds = array<i64: 1, 128>}, {transform_indices = @transform_3, window_bounds = array<i64: 1, 128, 128>}, {transform_indices = @transform_4, window_bounds = array<i64: 1, 1, 1, 128>}, {transform_indices = @transform_5, window_bounds = array<i64: 1, 1, 1, 128>}]} {
    %c0 = arith.constant 0 : index
    %c0_0 = arith.constant 0 : index
    %c0_1 = arith.constant 0 : index
    %0 = vector.load %arg2[%c0, %c0_0, %c0_1] : memref<1x128x128xbf16, #tpu.memory_space<vmem>>, vector<1x128x128xbf16>
    %1 = vector.shape_cast %0 : vector<1x128x128xbf16> to vector<128x128xbf16>
    %c0_2 = arith.constant 0 : index
    %c0_3 = arith.constant 0 : index
    %2 = vector.load %arg3[%c0_2, %c0_3] : memref<128x128xbf16, #tpu.memory_space<vmem>>, vector<128x128xbf16>
    %cst = arith.constant dense<0.000000e+00> : vector<128x128xf32>
    %3 = tpu.matmul %1, %2, %cst {dimension_numbers = #tpu.dot_dimension_numbers<[1], [0], [0], [1], [0, 0, 1, 1], [], []>} : vector<128x128xbf16>, vector<128x128xbf16>, vector<128x128xf32> -> vector<128x128xf32>
    %c0_4 = arith.constant 0 : index
    %c0_5 = arith.constant 0 : index
    %4 = vector.load %arg4[%c0_4, %c0_5] : memref<1x128xf32, #tpu.memory_space<vmem>>, vector<1x128xf32>
    %5 = vector.broadcast %4 : vector<1x128xf32> to vector<128x128xf32>
    %6 = arith.addf %3, %5 : vector<128x128xf32>
    %7 = arith.truncf %6 : vector<128x128xf32> to vector<128x128xbf16>
    %c0_6 = arith.constant 0 : index
    %c0_7 = arith.constant 0 : index
    %c0_8 = arith.constant 0 : index
    %8 = vector.load %arg5[%c0_6, %c0_7, %c0_8] : memref<1x128x128xbf16, #tpu.memory_space<vmem>>, vector<1x128x128xbf16>
    %9 = vector.shape_cast %8 : vector<1x128x128xbf16> to vector<128x128xbf16>
    %10 = vector.shape_cast %7 : vector<128x128xbf16> to vector<1x128x128xbf16>
    tpu.vector_store %arg5[%c0_6, %c0_7, %c0_8], %10 {strides = array<i32>} : memref<1x128x128xbf16, #tpu.memory_space<vmem>>, vector<1x128x128xbf16>,
    %c0_i32 = arith.constant 0 : i32
    %11 = arith.cmpi eq, %arg1, %c0_i32 : i32
    %12 = arith.extui %11 : i1 to i32
    %c0_i32_9 = arith.constant 0 : i32
    %13 = arith.cmpi ne, %12, %c0_i32_9 : i32
    scf.if %13 {
      %17 = tpu.iota {dimensions = array<i32: 0>} : vector<128x128xi32>
      %c64_i32 = arith.constant 64 : i32
      %18 = vector.broadcast %c64_i32 : i32 to vector<128x128xi32>
      %19 = arith.cmpi slt, %17, %18 : vector<128x128xi32>
      %cst_12 = arith.constant 0.000000e+00 : f32
      %20 = vector.broadcast %cst_12 : f32 to vector<128x128xf32>
      %21 = arith.select %19, %6, %20 : vector<128x128xi1>, vector<128x128xf32>
      %cst_13 = arith.constant dense<0.000000e+00> : vector<128xf32>
      %22 = vector.multi_reduction <add>, %21, %cst_13 [0] : vector<128x128xf32> to vector<128xf32>
      %23 = vector.shape_cast %22 : vector<128xf32> to vector<1x128xf32>
      %c0_14 = arith.constant 0 : index
      %c0_15 = arith.constant 0 : index
      %c0_16 = arith.constant 0 : index
      %c0_17 = arith.constant 0 : index
      %24 = vector.load %arg6[%c0_14, %c0_15, %c0_16, %c0_17] : memref<1x1x1x128xf32, #tpu.memory_space<vmem>>, vector<1x1x1x128xf32>
      %25 = vector.shape_cast %24 : vector<1x1x1x128xf32> to vector<1x128xf32>
      %26 = vector.shape_cast %23 : vector<1x128xf32> to vector<1x1x1x128xf32>
      tpu.vector_store %arg6[%c0_14, %c0_15, %c0_16, %c0_17], %26 {strides = array<i32>} : memref<1x1x1x128xf32, #tpu.memory_space<vmem>>, vector<1x1x1x128xf32>,
      %27 = arith.mulf %21, %21 : vector<128x128xf32>
      %cst_18 = arith.constant dense<0.000000e+00> : vector<128xf32>
      %28 = vector.multi_reduction <add>, %27, %cst_18 [0] : vector<128x128xf32> to vector<128xf32>
      %29 = vector.shape_cast %28 : vector<128xf32> to vector<1x128xf32>
      %c0_19 = arith.constant 0 : index
      %c0_20 = arith.constant 0 : index
      %c0_21 = arith.constant 0 : index
      %c0_22 = arith.constant 0 : index
      %30 = vector.load %arg7[%c0_19, %c0_20, %c0_21, %c0_22] : memref<1x1x1x128xf32, #tpu.memory_space<vmem>>, vector<1x1x1x128xf32>
      %31 = vector.shape_cast %30 : vector<1x1x1x128xf32> to vector<1x128xf32>
      %32 = vector.shape_cast %29 : vector<1x128xf32> to vector<1x1x1x128xf32>
      tpu.vector_store %arg7[%c0_19, %c0_20, %c0_21, %c0_22], %32 {strides = array<i32>} : memref<1x1x1x128xf32, #tpu.memory_space<vmem>>, vector<1x1x1x128xf32>,
    } else {
    }
    %c0_i32_10 = arith.constant 0 : i32
    %14 = arith.cmpi ne, %arg1, %c0_i32_10 : i32
    %15 = arith.extui %14 : i1 to i32
    %c0_i32_11 = arith.constant 0 : i32
    %16 = arith.cmpi ne, %15, %c0_i32_11 : i32
    scf.if %16 {
      %cst_12 = arith.constant dense<0.000000e+00> : vector<128xf32>
      %17 = vector.multi_reduction <add>, %6, %cst_12 [0] : vector<128x128xf32> to vector<128xf32>
      %18 = vector.shape_cast %17 : vector<128xf32> to vector<1x128xf32>
      %c0_13 = arith.constant 0 : index
      %c0_14 = arith.constant 0 : index
      %c0_15 = arith.constant 0 : index
      %c0_16 = arith.constant 0 : index
      %19 = vector.load %arg6[%c0_13, %c0_14, %c0_15, %c0_16] : memref<1x1x1x128xf32, #tpu.memory_space<vmem>>, vector<1x1x1x128xf32>
      %20 = vector.shape_cast %19 : vector<1x1x1x128xf32> to vector<1x128xf32>
      %21 = vector.shape_cast %18 : vector<1x128xf32> to vector<1x1x1x128xf32>
      tpu.vector_store %arg6[%c0_13, %c0_14, %c0_15, %c0_16], %21 {strides = array<i32>} : memref<1x1x1x128xf32, #tpu.memory_space<vmem>>, vector<1x1x1x128xf32>,
      %22 = arith.mulf %6, %6 : vector<128x128xf32>
      %cst_17 = arith.constant dense<0.000000e+00> : vector<128xf32>
      %23 = vector.multi_reduction <add>, %22, %cst_17 [0] : vector<128x128xf32> to vector<128xf32>
      %24 = vector.shape_cast %23 : vector<128xf32> to vector<1x128xf32>
      %c0_18 = arith.constant 0 : index
      %c0_19 = arith.constant 0 : index
      %c0_20 = arith.constant 0 : index
      %c0_21 = arith.constant 0 : index
      %25 = vector.load %arg7[%c0_18, %c0_19, %c0_20, %c0_21] : memref<1x1x1x128xf32, #tpu.memory_space<vmem>>, vector<1x1x1x128xf32>
      %26 = vector.shape_cast %25 : vector<1x1x1x128xf32> to vector<1x128xf32>
      %27 = vector.shape_cast %24 : vector<1x128xf32> to vector<1x1x1x128xf32>
      tpu.vector_store %arg7[%c0_18, %c0_19, %c0_20, %c0_21], %27 {strides = array<i32>} : memref<1x1x1x128xf32, #tpu.memory_space<vmem>>, vector<1x1x1x128xf32>,
    } else {
    }
    return
  }
  func.func @transform_0(%arg0: i32, %arg1: i32) -> (i32, i32, i32) {
    %c0_i32 = arith.constant 0 : i32
    %c0_i32_0 = arith.constant 0 : i32
    return %arg0, %arg1, %c0_i32 : i32, i32, i32
  }
  func.func @transform_1(%arg0: i32, %arg1: i32) -> (i32, i32) {
    %c0_i32 = arith.constant 0 : i32
    %c0_i32_0 = arith.constant 0 : i32
    %c0_i32_1 = arith.constant 0 : i32
    return %c0_i32, %c0_i32_0 : i32, i32
  }
  func.func @transform_2(%arg0: i32, %arg1: i32) -> (i32, i32) {
    %c0_i32 = arith.constant 0 : i32
    %c0_i32_0 = arith.constant 0 : i32
    %c0_i32_1 = arith.constant 0 : i32
    return %c0_i32, %c0_i32_0 : i32, i32
  }
  func.func @transform_3(%arg0: i32, %arg1: i32) -> (i32, i32, i32) {
    %c0_i32 = arith.constant 0 : i32
    %c0_i32_0 = arith.constant 0 : i32
    return %arg0, %arg1, %c0_i32 : i32, i32, i32
  }
  func.func @transform_4(%arg0: i32, %arg1: i32) -> (i32, i32, i32, i32) {
    %c0_i32 = arith.constant 0 : i32
    %c0_i32_0 = arith.constant 0 : i32
    %c0_i32_1 = arith.constant 0 : i32
    return %arg0, %arg1, %c0_i32, %c0_i32_0 : i32, i32, i32, i32
  }
  func.func @transform_5(%arg0: i32, %arg1: i32) -> (i32, i32, i32, i32) {
    %c0_i32 = arith.constant 0 : i32
    %c0_i32_0 = arith.constant 0 : i32
    %c0_i32_1 = arith.constant 0 : i32
    return %arg0, %arg1, %c0_i32, %c0_i32_0 : i32, i32, i32, i32
  }
}

module attributes {stable_mosaic.version = 11 : i64} {
  func.func @bn_relu_transpose_kernel(%arg0: i32, %arg1: i32, %arg2: memref<1x128x128xbf16, #tpu.memory_space<vmem>>, %arg3: memref<1x128xf32, #tpu.memory_space<vmem>>, %arg4: memref<1x128xf32, #tpu.memory_space<vmem>>, %arg5: memref<1x128x128xf32, #tpu.memory_space<vmem>>) attributes {dimension_semantics = [#tpu.dimension_semantics<parallel>, #tpu.dimension_semantics<parallel>], iteration_bounds = array<i64: 2, 1>, scalar_prefetch = 0 : i64, scratch_operands = 0 : i64, tpu.core_type = #tpu.core_type<tc>, window_params = [{transform_indices = @transform_0, window_bounds = array<i64: 1, 128, 128>}, {pipeline_mode = #tpu.pipeline_mode<synchronous>, transform_indices = @transform_1, window_bounds = array<i64: 1, 128>}, {pipeline_mode = #tpu.pipeline_mode<synchronous>, transform_indices = @transform_2, window_bounds = array<i64: 1, 128>}, {transform_indices = @transform_3, window_bounds = array<i64: 1, 128, 128>}]} {
    %c0 = arith.constant 0 : index
    %c0_0 = arith.constant 0 : index
    %c0_1 = arith.constant 0 : index
    %0 = vector.load %arg2[%c0, %c0_0, %c0_1] : memref<1x128x128xbf16, #tpu.memory_space<vmem>>, vector<1x128x128xbf16>
    %1 = vector.shape_cast %0 : vector<1x128x128xbf16> to vector<128x128xbf16>
    %2 = arith.extf %1 : vector<128x128xbf16> to vector<128x128xf32>
    %c0_2 = arith.constant 0 : index
    %c0_3 = arith.constant 0 : index
    %3 = vector.load %arg3[%c0_2, %c0_3] : memref<1x128xf32, #tpu.memory_space<vmem>>, vector<1x128xf32>
    %4 = vector.broadcast %3 : vector<1x128xf32> to vector<128x128xf32>
    %5 = arith.mulf %2, %4 : vector<128x128xf32>
    %c0_4 = arith.constant 0 : index
    %c0_5 = arith.constant 0 : index
    %6 = vector.load %arg4[%c0_4, %c0_5] : memref<1x128xf32, #tpu.memory_space<vmem>>, vector<1x128xf32>
    %7 = vector.broadcast %6 : vector<1x128xf32> to vector<128x128xf32>
    %8 = arith.addf %5, %7 : vector<128x128xf32>
    %cst = arith.constant 0.000000e+00 : f32
    %9 = vector.broadcast %cst : f32 to vector<128x128xf32>
    %10 = arith.maximumf %8, %9 : vector<128x128xf32>
    %11 = tpu.transpose %10, [1, 0] : vector<128x128xf32> -> vector<128x128xf32>
    %c0_6 = arith.constant 0 : index
    %c0_7 = arith.constant 0 : index
    %c0_8 = arith.constant 0 : index
    %12 = vector.load %arg5[%c0_6, %c0_7, %c0_8] : memref<1x128x128xf32, #tpu.memory_space<vmem>>, vector<1x128x128xf32>
    %13 = vector.shape_cast %12 : vector<1x128x128xf32> to vector<128x128xf32>
    %14 = vector.shape_cast %11 : vector<128x128xf32> to vector<1x128x128xf32>
    tpu.vector_store %arg5[%c0_6, %c0_7, %c0_8], %14 {strides = array<i32>} : memref<1x128x128xf32, #tpu.memory_space<vmem>>, vector<1x128x128xf32>,
    return
  }
  func.func @transform_0(%arg0: i32, %arg1: i32) -> (i32, i32, i32) {
    %c0_i32 = arith.constant 0 : i32
    %c0_i32_0 = arith.constant 0 : i32
    return %arg0, %arg1, %c0_i32 : i32, i32, i32
  }
  func.func @transform_1(%arg0: i32, %arg1: i32) -> (i32, i32) {
    %c0_i32 = arith.constant 0 : i32
    %c0_i32_0 = arith.constant 0 : i32
    %c0_i32_1 = arith.constant 0 : i32
    return %c0_i32, %c0_i32_0 : i32, i32
  }
  func.func @transform_2(%arg0: i32, %arg1: i32) -> (i32, i32) {
    %c0_i32 = arith.constant 0 : i32
    %c0_i32_0 = arith.constant 0 : i32
    %c0_i32_1 = arith.constant 0 : i32
    return %c0_i32, %c0_i32_0 : i32, i32
  }
  func.func @transform_3(%arg0: i32, %arg1: i32) -> (i32, i32, i32) {
    %c0_i32 = arith.constant 0 : i32
    %c0_i32_0 = arith.constant 0 : i32
    return %arg0, %c0_i32, %arg1 : i32, i32, i32
  }
}

</mosaic_0001>

<llo_original>
// kernel: downsample_forward.3
$region0: #{downsample_forward.3}
  #allocation0 [shape = 'u32[]', space=smem, size = 0x4, offset = 0x4, fixed_abs, tag = 'smem constant byte address 0x4 - core index']
  #allocation1 [shape = 'u32[72,128]{1,0:T(1,128)}', space=vmem, size = 0x9000, scoped, tag = 'internal scratch']
  %s0 = inlined_call_operand.vmem [shape: bf16[2,128,128], index: 0, kind: input, shape index: {}]
  %s1 = inlined_call_operand.vmem [shape: f32[1,128], index: 1, kind: input, shape index: {}]
  %s2 = inlined_call_operand.vmem [shape: f32[1,128], index: 2, kind: input, shape index: {}]
  %s3 = inlined_call_operand.vmem [shape: f32[2,128,128], index: 3, kind: output, shape index: {}]
  %s4 = sld [smem:[#allocation0]]
  $region45: #{downsample_forward.3} parent=0
    _
  %s6 = ssub.s32 1, %s4
  %s7 = scalar_select 0, %s6, %s4
  loop: start=0, step=1, limit=4
  $region2: #{downsample_forward.3} parent=0 // loop_pre_header
    _
  $region3: #{downsample_forward.3} parent=0 // loop_header
    %s9 = sphi 0, %s13
    %p10 = scmp.ge.s32.totalorder %s9, 4
    %s16 = sphi 0, %s28
    %s17 = sphi 0, %s24
    %s18 = sphi 0, %s16
    %s19 = sphi 0, %s17
    %s20 = sphi 0, %s18
    %s21 = sphi 0, %s19
    %s33 = sphi 0, %s35
    %s36 = sphi 0, %s33
    %s37 = sphi 0, %s36
    %s53 = sphi 0, %s37
    %s57 = sphi 0, %s57
    %s59 = sphi 0, %s57
    %s60 = sphi 0, %s59
    %s74 = sphi 0, %s60
    %s78 = sphi 0, %s78
    %s80 = sphi 0, %s78
    %s81 = sphi 0, %s80
    %s95 = sphi 0, %s81
    %s103 = sphi 0, %s105
    %s106 = sphi 0, %s103
    %s107 = sphi 0, %s106
    %s123 = sphi 0, %s107
  $region4: #{downsample_forward.3} parent=0 // loop_header_branch
    %12 = sbr.rel (%p10) target = $region8
  $region5: #{downsample_forward.3} parent=0 // loop_body
    %s14 = ssub.s32 %s9, 1
    %s15 = ssub.s32 %s9, 2
    %s22 = sadd.s32 1, %s17
    %p23 = scmp.ge.s32.totalorder %s22, 1
    %s24 = scalar_select %p23, 0, %s22
    %s25 = sadd.s32 1, %s16
    %s26 = scalar_select %p23, %s25, %s16
    %p27 = scmp.ge.s32.totalorder %s26, 2
    %s28 = scalar_select %p27, 0, %s26
    %s29 = ssub.s32 %s16, %s28
    %s30 = ssub.s32 %s17, %s24
    %s31 = sor.u32 %s29, %s30
    %p32 = scmp.eq.s32.totalorder %s31, 0
    %s34 = sadd.s32 %s33, 1
    %s35 = scalar_select %p32, %s33, %s34
    %p38 = pneg %p32
    %p39 = scmp.eq.s32.totalorder %s9, 1
    %p40 = por %p38, %p39
    %p41 = scmp.ne.s32.totalorder %s33, %s36
    %p42 = scmp.eq.s32.totalorder %s9, 0
    %p43 = por %p41, %p42
    %p44 = scmp.ne.s32.totalorder %s33, %s36
    %p45 = scmp.eq.s32.totalorder %s14, 1
    %p46 = por %p44, %p45
    %p47 = scmp.ne.s32.totalorder %s36, %s37
    %p48 = scmp.eq.s32.totalorder %s14, 0
    %p49 = por %p47, %p48
    %p50 = scmp.ne.s32.totalorder %s36, %s37
    %p51 = scmp.eq.s32.totalorder %s15, 1
    %p52 = por %p50, %p51
    %p54 = scmp.ne.s32.totalorder %s37, %s53
    %p55 = scmp.eq.s32.totalorder %s15, 0
    %p56 = por %p54, %p55
    %s58 = sadd.s32 %s57, 1
    %p61 = scmp.eq.s32.totalorder %s9, 1
    %p62 = scmp.ne.s32.totalorder %s57, %s59
    %p63 = scmp.eq.s32.totalorder %s9, 0
    %p64 = por %p62, %p63
    %p65 = scmp.ne.s32.totalorder %s57, %s59
    %p66 = scmp.eq.s32.totalorder %s14, 1
    %p67 = por %p65, %p66
    %p68 = scmp.ne.s32.totalorder %s59, %s60
    %p69 = scmp.eq.s32.totalorder %s14, 0
    %p70 = por %p68, %p69
    %p71 = scmp.ne.s32.totalorder %s59, %s60
    %p72 = scmp.eq.s32.totalorder %s15, 1
    %p73 = por %p71, %p72
    %p75 = scmp.ne.s32.totalorder %s60, %s74
    %p76 = scmp.eq.s32.totalorder %s15, 0
    %p77 = por %p75, %p76
    %s79 = sadd.s32 %s78, 1
    %p82 = scmp.eq.s32.totalorder %s9, 1
    %p83 = scmp.ne.s32.totalorder %s78, %s80
    %p84 = scmp.eq.s32.totalorder %s9, 0
    %p85 = por %p83, %p84
    %p86 = scmp.ne.s32.totalorder %s78, %s80
    %p87 = scmp.eq.s32.totalorder %s14, 1
    %p88 = por %p86, %p87
    %p89 = scmp.ne.s32.totalorder %s80, %s81
    %p90 = scmp.eq.s32.totalorder %s14, 0
    %p91 = por %p89, %p90
    %p92 = scmp.ne.s32.totalorder %s80, %s81
    %p93 = scmp.eq.s32.totalorder %s15, 1
    %p94 = por %p92, %p93
    %p96 = scmp.ne.s32.totalorder %s81, %s95
    %p97 = scmp.eq.s32.totalorder %s15, 0
    %p98 = por %p96, %p97
    %s99 = ssub.s32 %s16, %s28
    %s100 = ssub.s32 %s17, %s24
    %s101 = sor.u32 %s99, %s100
    %p102 = scmp.eq.s32.totalorder %s101, 0
    %s104 = sadd.s32 %s103, 1
    %s105 = scalar_select %p102, %s103, %s104
    %p108 = pneg %p102
    %p109 = scmp.eq.s32.totalorder %s9, 1
    %p110 = por %p108, %p109
    %p111 = scmp.ne.s32.totalorder %s103, %s106
    %p112 = scmp.eq.s32.totalorder %s9, 0
    %p113 = por %p111, %p112
    %p114 = scmp.ne.s32.totalorder %s103, %s106
    %p115 = scmp.eq.s32.totalorder %s14, 1
    %p116 = por %p114, %p115
    %p117 = scmp.ne.s32.totalorder %s106, %s107
    %p118 = scmp.eq.s32.totalorder %s14, 0
    %p119 = por %p117, %p118
    %p120 = scmp.ne.s32.totalorder %s106, %s107
    %p121 = scmp.eq.s32.totalorder %s15, 1
    %p122 = por %p120, %p121
    %p124 = scmp.ne.s32.totalorder %s107, %s123
    %p125 = scmp.eq.s32.totalorder %s15, 0
    %p126 = por %p124, %p125
    %p127 = scmp.le.s32.totalorder 1, %s9
    %p128 = scmp.lt.s32.totalorder %s9, 3
    %p129 = pnand %p127, %p128
    %p130 = pneg %p129
    // Predicated region
    $region9: #{downsample_forward.3} parent=5 // pred_check
      _
    $region10: #{downsample_forward.3} parent=5 // pred_check_branch
      %132 = sbr.rel (%p129) target = $region12
    $region11: #{downsample_forward.3} parent=5 // pred_region
      %s133 = ssub.s32 %s9, 1
      // Predicated region
      $region13: #{downsample_forward.3} parent=11 // pred_check
        %p134 = pneg %p70
      $region14: #{downsample_forward.3} parent=11 // pred_check_branch
        %136 = sbr.rel (%p134) target = $region16
      $region15: #{downsample_forward.3} parent=11 // pred_region
        _
      $region16: #{downsample_forward.3} parent=11 // pred_fallthru
        _
      // Predicated region
      $region17: #{downsample_forward.3} parent=11 // pred_check
        %p137 = pneg %p91
      $region18: #{downsample_forward.3} parent=11 // pred_check_branch
        %139 = sbr.rel (%p137) target = $region20
      $region19: #{downsample_forward.3} parent=11 // pred_region
        _
      $region20: #{downsample_forward.3} parent=11 // pred_fallthru
        _
    $region12: #{downsample_forward.3} parent=5 // pred_fallthru
      _
    %p140 = scmp.lt.s32.totalorder %s9, 2
    // Predicated region
    $region21: #{downsample_forward.3} parent=5 // pred_check
      %p141 = pneg %p140
    $region22: #{downsample_forward.3} parent=5 // pred_check_branch
      %143 = sbr.rel (%p141) target = $region24
    $region23: #{downsample_forward.3} parent=5 // pred_region
      // Predicated region
      $region25: #{downsample_forward.3} parent=23 // pred_check
        %p144 = pneg %p43
      $region26: #{downsample_forward.3} parent=23 // pred_check_branch
        %146 = sbr.rel (%p144) target = $region28
      $region27: #{downsample_forward.3} parent=23 // pred_region
        %s147 = smul.u32 16, %s17
        %p148 = scmp.lt.s32.totalorder %s16, 1
        %s149 = scalar_select %p148, %s16, 1
        %p150 = scmp.lt.s32.totalorder %s147, 15
        %s151 = scalar_select %p150, %s147, 15
        %s152 = smul.addr %s149, 16
        %s153 = sadd.s32 %s151, %s152
        %s154 = smul.addr %s153, 4
        %s155 = scalar_lea.vmem %s0, %s154
        %s156 = smul.u32 16, %s17
      $region28: #{downsample_forward.3} parent=23 // pred_fallthru
        _
    $region24: #{downsample_forward.3} parent=5 // pred_fallthru
      _
    %p157 = scmp.le.s32.totalorder 1, %s9
    %p158 = scmp.lt.s32.totalorder %s9, 3
    %p159 = pnand %p157, %p158
    %p160 = pneg %p159
    // Predicated region
    $region29: #{downsample_forward.3} parent=5 // pred_check
      _
    $region30: #{downsample_forward.3} parent=5 // pred_check_branch
      %162 = sbr.rel (%p159) target = $region32
    $region31: #{downsample_forward.3} parent=5 // pred_region
      %s163 = ssub.s32 %s9, 1
      %s164 = smul.u32 16, %s19
      %p165 = scmp.lt.s32.totalorder %s18, 1
      %s166 = scalar_select %p165, %s18, 1
      %p167 = scmp.lt.s32.totalorder %s164, 15
      %s168 = scalar_select %p167, %s164, 15
      %s169 = smul.addr %s166, 16
      %s170 = sadd.s32 %s168, %s169
      %s171 = smul.addr %s170, 4
      %s172 = scalar_lea.vmem %s0, %s171
      %p173 = pneg %p49
      %p174 = pneg %p46
      %p175 = pneg %p70
      %p176 = pneg %p67
      %p177 = pneg %p91
      %p178 = pneg %p88
      %p179 = pneg %p119
      %p180 = pneg %p116
      %p181 = scmp.lt.s32.totalorder %s18, 1
      %s182 = scalar_select %p181, %s18, 1
      %p183 = scmp.lt.s32.totalorder %s19, 0
      %s184 = scalar_select %p183, %s19, 0
      %s185 = smul.addr %s182, 16
      %s186 = sadd.s32 %s184, %s185
      %s187 = smul.addr %s186, 8
      %s188 = scalar_lea.vmem %s3, %s187
      %s189 = smul.u32 16, %s19
      %p190 = scmp.lt.s32.totalorder %s18, 1
      %s191 = scalar_select %p190, %s18, 1
      %p192 = scmp.lt.s32.totalorder %s189, 15
      %s193 = scalar_select %p192, %s189, 15
      %s194 = smul.addr %s191, 16
      %s195 = sadd.s32 %s193, %s194
      %s196 = smul.addr %s195, 4
      %s197 = scalar_lea.vmem %s0, %s196
      %s198 = smul.u32 16, %s19
      %p199 = scmp.lt.s32.totalorder %s18, 1
      %s200 = scalar_select %p199, %s18, 1
      %p201 = scmp.lt.s32.totalorder %s19, 0
      %s202 = scalar_select %p201, %s19, 0
      %s203 = smul.addr %s200, 16
      %s204 = sadd.s32 %s202, %s203
      %s205 = smul.addr %s204, 8
      %s206 = scalar_lea.vmem %s3, %s205
      %v207 = vld [vmem:[%s197] sm:$0xf]
      %v208 = vld [vmem:[%s197 + $0x4] sm:$0xf]
      %v209 = vld [vmem:[%s197 + $0x8] sm:$0xf]
      %v210 = vld [vmem:[%s197 + $0xc] sm:$0xf]
      %v211 = vld [vmem:[%s197 + $0x10] sm:$0xf]
      %v212 = vld [vmem:[%s197 + $0x14] sm:$0xf]
      %v213 = vld [vmem:[%s197 + $0x18] sm:$0xf]
      %v214 = vld [vmem:[%s197 + $0x1c] sm:$0xf]
      %v215 = vld [vmem:[%s197 + $0x20] sm:$0xf]
      %v216 = vld [vmem:[%s197 + $0x24] sm:$0xf]
      %v217 = vld [vmem:[%s197 + $0x28] sm:$0xf]
      %v218 = vld [vmem:[%s197 + $0x2c] sm:$0xf]
      %v219 = vld [vmem:[%s197 + $0x30] sm:$0xf]
      %v220 = vld [vmem:[%s197 + $0x34] sm:$0xf]
      %v221 = vld [vmem:[%s197 + $0x38] sm:$0xf]
      %v222 = vld [vmem:[%s197 + $0x3c] sm:$0xf]
      %v223 = vunpack.c.l.bf16 %v207
      %v224 = vunpack.c.l.bf16 %v208
      %v225 = vunpack.c.l.bf16 %v209
      %v226 = vunpack.c.l.bf16 %v210
      %v227 = vunpack.c.l.bf16 %v211
      %v228 = vunpack.c.l.bf16 %v212
      %v229 = vunpack.c.l.bf16 %v213
      %v230 = vunpack.c.l.bf16 %v214
      %v231 = vunpack.c.l.bf16 %v215
      %v232 = vunpack.c.l.bf16 %v216
      %v233 = vunpack.c.l.bf16 %v217
      %v234 = vunpack.c.l.bf16 %v218
      %v235 = vunpack.c.l.bf16 %v219
      %v236 = vunpack.c.l.bf16 %v220
      %v237 = vunpack.c.l.bf16 %v221
      %v238 = vunpack.c.l.bf16 %v222
      %v239 = vld [vmem:[%s1] sm:$0x1]
      %v241 = vperm.slane %v239, 0
      %v243 = vmul.f32 %v223, %v241
      %v244 = vmul.f32 %v224, %v241
      %v245 = vmul.f32 %v225, %v241
      %v246 = vmul.f32 %v226, %v241
      %v247 = vmul.f32 %v227, %v241
      %v248 = vmul.f32 %v228, %v241
      %v249 = vmul.f32 %v229, %v241
      %v250 = vmul.f32 %v230, %v241
      %v251 = vmul.f32 %v231, %v241
      %v252 = vmul.f32 %v232, %v241
      %v253 = vmul.f32 %v233, %v241
      %v254 = vmul.f32 %v234, %v241
      %v255 = vmul.f32 %v235, %v241
      %v256 = vmul.f32 %v236, %v241
      %v257 = vmul.f32 %v237, %v241
      %v258 = vmul.f32 %v238, %v241
      %v259 = vld [vmem:[%s2] sm:$0x1]
      %v261 = vperm.slane %v259, 0
      %v263 = vadd.f32 %v243, %v261
      %v264 = vadd.f32 %v244, %v261
      %v265 = vadd.f32 %v245, %v261
      %v266 = vadd.f32 %v246, %v261
      %v267 = vadd.f32 %v247, %v261
      %v268 = vadd.f32 %v248, %v261
      %v269 = vadd.f32 %v249, %v261
      %v270 = vadd.f32 %v250, %v261
      %v271 = vadd.f32 %v251, %v261
      %v272 = vadd.f32 %v252, %v261
      %v273 = vadd.f32 %v253, %v261
      %v274 = vadd.f32 %v254, %v261
      %v275 = vadd.f32 %v255, %v261
      %v276 = vadd.f32 %v256, %v261
      %v277 = vadd.f32 %v257, %v261
      %v278 = vadd.f32 %v258, %v261
      %v279 = vmax.f32 %v263, 0.0
      %v280 = vmax.f32 %v264, 0.0
      %v281 = vmax.f32 %v265, 0.0
      %v282 = vmax.f32 %v266, 0.0
      %v283 = vmax.f32 %v267, 0.0
      %v284 = vmax.f32 %v268, 0.0
      %v285 = vmax.f32 %v269, 0.0
      %v286 = vmax.f32 %v270, 0.0
      %v287 = vmax.f32 %v271, 0.0
      %v288 = vmax.f32 %v272, 0.0
      %v289 = vmax.f32 %v273, 0.0
      %v290 = vmax.f32 %v274, 0.0
      %v291 = vmax.f32 %v275, 0.0
      %v292 = vmax.f32 %v276, 0.0
      %v293 = vmax.f32 %v277, 0.0
      %v294 = vmax.f32 %v278, 0.0
      %295 = vxpose.xlu0.b32.start [1/16] %v279, 128
      %296 = vxpose.xlu0.b32.cont [2/16] %v280, 128
      %297 = vxpose.xlu0.b32.cont [3/16] %v281, 128
      %298 = vxpose.xlu0.b32.cont [4/16] %v282, 128
      %299 = vxpose.xlu0.b32.cont [5/16] %v283, 128
      %300 = vxpose.xlu0.b32.cont [6/16] %v284, 128
      %301 = vxpose.xlu0.b32.cont [7/16] %v285, 128
      %302 = vxpose.xlu0.b32.cont [8/16] %v286, 128
      %303 = vxpose.xlu0.b32.cont [9/16] %v287, 128
      %304 = vxpose.xlu0.b32.cont [10/16] %v288, 128
      %305 = vxpose.xlu0.b32.cont [11/16] %v289, 128
      %306 = vxpose.xlu0.b32.cont [12/16] %v290, 128
      %307 = vxpose.xlu0.b32.cont [13/16] %v291, 128
      %308 = vxpose.xlu0.b32.cont [14/16] %v292, 128
      %309 = vxpose.xlu0.b32.cont [15/16] %v293, 128
      %310 = vxpose.xlu0.b32.end [16/16] %v294, 128
      %v311 = vpop.trf.xlu0
      %v312 = vpop.trf.xlu0
      %v313 = vpop.trf.xlu0
      %v314 = vpop.trf.xlu0
      %v315 = vpop.trf.xlu0
      %v316 = vpop.trf.xlu0
      %v317 = vpop.trf.xlu0
      %v318 = vpop.trf.xlu0
      %v319 = vpop.trf.xlu0
      %v320 = vpop.trf.xlu0
      %v321 = vpop.trf.xlu0
      %v322 = vpop.trf.xlu0
      %v323 = vpop.trf.xlu0
      %v324 = vpop.trf.xlu0
      %v325 = vpop.trf.xlu0
      %v326 = vpop.trf.xlu0
      %327 = vst [vmem:[%s206] sm:$0xff] %v311
      %328 = vst [vmem:[%s206 + $0x8] sm:$0xff] %v312
      %329 = vst [vmem:[%s206 + $0x10] sm:$0xff] %v313
      %330 = vst [vmem:[%s206 + $0x18] sm:$0xff] %v314
      %331 = vst [vmem:[%s206 + $0x20] sm:$0xff] %v315
      %332 = vst [vmem:[%s206 + $0x28] sm:$0xff] %v316
      %333 = vst [vmem:[%s206 + $0x30] sm:$0xff] %v317
      %334 = vst [vmem:[%s206 + $0x38] sm:$0xff] %v318
      %335 = vst [vmem:[%s206 + $0x40] sm:$0xff] %v319
      %336 = vst [vmem:[%s206 + $0x48] sm:$0xff] %v320
      %337 = vst [vmem:[%s206 + $0x50] sm:$0xff] %v321
      %338 = vst [vmem:[%s206 + $0x58] sm:$0xff] %v322
      %339 = vst [vmem:[%s206 + $0x60] sm:$0xff] %v323
      %340 = vst [vmem:[%s206 + $0x68] sm:$0xff] %v324
      %341 = vst [vmem:[%s206 + $0x70] sm:$0xff] %v325
      %342 = vst [vmem:[%s206 + $0x78] sm:$0xff] %v326
      %p343 = scmp.lt.s32.totalorder %s18, 1
      %s344 = scalar_select %p343, %s18, 1
      %p345 = scmp.lt.s32.totalorder %s19, 0
      %s346 = scalar_select %p345, %s19, 0
      %s347 = smul.addr %s344, 16
      %s348 = sadd.s32 %s346, %s347
      %s349 = smul.addr %s348, 8
      %s350 = scalar_lea.vmem %s3, %s349
      // Predicated region
      $region33: #{downsample_forward.3} parent=31 // pred_check
        %p351 = pneg %p116
      $region34: #{downsample_forward.3} parent=31 // pred_check_branch
        %353 = sbr.rel (%p351) target = $region36
      $region35: #{downsample_forward.3} parent=31 // pred_region
        _
      $region36: #{downsample_forward.3} parent=31 // pred_fallthru
        _
    $region32: #{downsample_forward.3} parent=5 // pred_fallthru
      _
    %p354 = scmp.le.s32.totalorder 2, %s9
    // Predicated region
    $region37: #{downsample_forward.3} parent=5 // pred_check
      %p355 = pneg %p354
    $region38: #{downsample_forward.3} parent=5 // pred_check_branch
      %357 = sbr.rel (%p355) target = $region40
    $region39: #{downsample_forward.3} parent=5 // pred_region
      %s358 = ssub.s32 %s9, 2
      // Predicated region
      $region41: #{downsample_forward.3} parent=39 // pred_check
        %p359 = pneg %p122
      $region42: #{downsample_forward.3} parent=39 // pred_check_branch
        %361 = sbr.rel (%p359) target = $region44
      $region43: #{downsample_forward.3} parent=39 // pred_region
        %p362 = scmp.lt.s32.totalorder %s20, 1
        %s363 = scalar_select %p362, %s20, 1
        %p364 = scmp.lt.s32.totalorder %s21, 0
        %s365 = scalar_select %p364, %s21, 0
        %s366 = smul.addr %s363, 16
        %s367 = sadd.s32 %s365, %s366
        %s368 = smul.addr %s367, 8
        %s369 = scalar_lea.vmem %s3, %s368
      $region44: #{downsample_forward.3} parent=39 // pred_fallthru
        _
    $region40: #{downsample_forward.3} parent=5 // pred_fallthru
      _
  $region6: #{downsample_forward.3} parent=0 // loop_footer
    %s13 = sadd.s32 1, %s9
  $region7: #{downsample_forward.3} parent=0 // loop_footer_branch
    %8 = sbr.rel target = $region3
  $region8: #{downsample_forward.3} parent=0 // loop_exit
    _

// kernel: downsample_forward.2
$region0: #{downsample_forward.2}
  #allocation0 [shape = 'u32[]', space=smem, size = 0x4, offset = 0x4, fixed_abs, tag = 'smem constant byte address 0x4 - core index']
  #allocation1 [shape = 'u32[72,128]{1,0:T(1,128)}', space=vmem, size = 0x9000, scoped, tag = 'internal scratch']
  %s0 = inlined_call_operand.vmem [shape: bf16[2,128,128], index: 0, kind: input, shape index: {}]
  %s1 = inlined_call_operand.vmem [shape: bf16[128,128], index: 1, kind: input, shape index: {}]
  %s2 = inlined_call_operand.vmem [shape: f32[1,128], index: 2, kind: input, shape index: {}]
  %s3 = inlined_call_operand.vmem [shape: bf16[2,128,128], index: 3, kind: output, shape index: {0}]
  %s4 = inlined_call_operand.vmem [shape: f32[2,1,1,128], index: 4, kind: output, shape index: {1}]
  %s5 = inlined_call_operand.vmem [shape: f32[2,1,1,128], index: 5, kind: output, shape index: {2}]
  %6 = xla_tuple %s3, %s4, %s5
  %s7 = sld [smem:[#allocation0]]
  $region69: #{downsample_forward.2} parent=0
    _
  %s9 = ssub.s32 1, %s7
  %s10 = scalar_select 0, %s9, %s7
  loop: start=0, step=1, limit=4
  $region2: #{downsample_forward.2} parent=0 // loop_pre_header
    _
  $region3: #{downsample_forward.2} parent=0 // loop_header
    %s12 = sphi 0, %s16
    %p13 = scmp.ge.s32.totalorder %s12, 4
    %s19 = sphi 0, %s31
    %s20 = sphi 0, %s27
    %s21 = sphi 0, %s19
    %s22 = sphi 0, %s20
    %s23 = sphi 0, %s21
    %s24 = sphi 0, %s22
    %s36 = sphi 0, %s38
    %s39 = sphi 0, %s36
    %s40 = sphi 0, %s39
    %s56 = sphi 0, %s40
    %s60 = sphi 0, %s60
    %s62 = sphi 0, %s60
    %s63 = sphi 0, %s62
    %s77 = sphi 0, %s63
    %s81 = sphi 0, %s81
    %s83 = sphi 0, %s81
    %s84 = sphi 0, %s83
    %s98 = sphi 0, %s84
    %s106 = sphi 0, %s108
    %s109 = sphi 0, %s106
    %s110 = sphi 0, %s109
    %s126 = sphi 0, %s110
    %s134 = sphi 0, %s136
    %s137 = sphi 0, %s134
    %s138 = sphi 0, %s137
    %s154 = sphi 0, %s138
    %s162 = sphi 0, %s164
    %s165 = sphi 0, %s162
    %s166 = sphi 0, %s165
    %s182 = sphi 0, %s166
  $region4: #{downsample_forward.2} parent=0 // loop_header_branch
    %15 = sbr.rel (%p13) target = $region8
  $region5: #{downsample_forward.2} parent=0 // loop_body
    %s17 = ssub.s32 %s12, 1
    %s18 = ssub.s32 %s12, 2
    %s25 = sadd.s32 1, %s20
    %p26 = scmp.ge.s32.totalorder %s25, 1
    %s27 = scalar_select %p26, 0, %s25
    %s28 = sadd.s32 1, %s19
    %s29 = scalar_select %p26, %s28, %s19
    %p30 = scmp.ge.s32.totalorder %s29, 2
    %s31 = scalar_select %p30, 0, %s29
    %s32 = ssub.s32 %s19, %s31
    %s33 = ssub.s32 %s20, %s27
    %s34 = sor.u32 %s32, %s33
    %p35 = scmp.eq.s32.totalorder %s34, 0
    %s37 = sadd.s32 %s36, 1
    %s38 = scalar_select %p35, %s36, %s37
    %p41 = pneg %p35
    %p42 = scmp.eq.s32.totalorder %s12, 1
    %p43 = por %p41, %p42
    %p44 = scmp.ne.s32.totalorder %s36, %s39
    %p45 = scmp.eq.s32.totalorder %s12, 0
    %p46 = por %p44, %p45
    %p47 = scmp.ne.s32.totalorder %s36, %s39
    %p48 = scmp.eq.s32.totalorder %s17, 1
    %p49 = por %p47, %p48
    %p50 = scmp.ne.s32.totalorder %s39, %s40
    %p51 = scmp.eq.s32.totalorder %s17, 0
    %p52 = por %p50, %p51
    %p53 = scmp.ne.s32.totalorder %s39, %s40
    %p54 = scmp.eq.s32.totalorder %s18, 1
    %p55 = por %p53, %p54
    %p57 = scmp.ne.s32.totalorder %s40, %s56
    %p58 = scmp.eq.s32.totalorder %s18, 0
    %p59 = por %p57, %p58
    %s61 = sadd.s32 %s60, 1
    %p64 = scmp.eq.s32.totalorder %s12, 1
    %p65 = scmp.ne.s32.totalorder %s60, %s62
    %p66 = scmp.eq.s32.totalorder %s12, 0
    %p67 = por %p65, %p66
    %p68 = scmp.ne.s32.totalorder %s60, %s62
    %p69 = scmp.eq.s32.totalorder %s17, 1
    %p70 = por %p68, %p69
    %p71 = scmp.ne.s32.totalorder %s62, %s63
    %p72 = scmp.eq.s32.totalorder %s17, 0
    %p73 = por %p71, %p72
    %p74 = scmp.ne.s32.totalorder %s62, %s63
    %p75 = scmp.eq.s32.totalorder %s18, 1
    %p76 = por %p74, %p75
    %p78 = scmp.ne.s32.totalorder %s63, %s77
    %p79 = scmp.eq.s32.totalorder %s18, 0
    %p80 = por %p78, %p79
    %s82 = sadd.s32 %s81, 1
    %p85 = scmp.eq.s32.totalorder %s12, 1
    %p86 = scmp.ne.s32.totalorder %s81, %s83
    %p87 = scmp.eq.s32.totalorder %s12, 0
    %p88 = por %p86, %p87
    %p89 = scmp.ne.s32.totalorder %s81, %s83
    %p90 = scmp.eq.s32.totalorder %s17, 1
    %p91 = por %p89, %p90
    %p92 = scmp.ne.s32.totalorder %s83, %s84
    %p93 = scmp.eq.s32.totalorder %s17, 0
    %p94 = por %p92, %p93
    %p95 = scmp.ne.s32.totalorder %s83, %s84
    %p96 = scmp.eq.s32.totalorder %s18, 1
    %p97 = por %p95, %p96
    %p99 = scmp.ne.s32.totalorder %s84, %s98
    %p100 = scmp.eq.s32.totalorder %s18, 0
    %p101 = por %p99, %p100
    %s102 = ssub.s32 %s19, %s31
    %s103 = ssub.s32 %s20, %s27
    %s104 = sor.u32 %s102, %s103
    %p105 = scmp.eq.s32.totalorder %s104, 0
    %s107 = sadd.s32 %s106, 1
    %s108 = scalar_select %p105, %s106, %s107
    %p111 = pneg %p105
    %p112 = scmp.eq.s32.totalorder %s12, 1
    %p113 = por %p111, %p112
    %p114 = scmp.ne.s32.totalorder %s106, %s109
    %p115 = scmp.eq.s32.totalorder %s12, 0
    %p116 = por %p114, %p115
    %p117 = scmp.ne.s32.totalorder %s106, %s109
    %p118 = scmp.eq.s32.totalorder %s17, 1
    %p119 = por %p117, %p118
    %p120 = scmp.ne.s32.totalorder %s109, %s110
    %p121 = scmp.eq.s32.totalorder %s17, 0
    %p122 = por %p120, %p121
    %p123 = scmp.ne.s32.totalorder %s109, %s110
    %p124 = scmp.eq.s32.totalorder %s18, 1
    %p125 = por %p123, %p124
    %p127 = scmp.ne.s32.totalorder %s110, %s126
    %p128 = scmp.eq.s32.totalorder %s18, 0
    %p129 = por %p127, %p128
    %s130 = ssub.s32 %s19, %s31
    %s131 = ssub.s32 %s20, %s27
    %s132 = sor.u32 %s130, %s131
    %p133 = scmp.eq.s32.totalorder %s132, 0
    %s135 = sadd.s32 %s134, 1
    %s136 = scalar_select %p133, %s134, %s135
    %p139 = pneg %p133
    %p140 = scmp.eq.s32.totalorder %s12, 1
    %p141 = por %p139, %p140
    %p142 = scmp.ne.s32.totalorder %s134, %s137
    %p143 = scmp.eq.s32.totalorder %s12, 0
    %p144 = por %p142, %p143
    %p145 = scmp.ne.s32.totalorder %s134, %s137
    %p146 = scmp.eq.s32.totalorder %s17, 1
    %p147 = por %p145, %p146
    %p148 = scmp.ne.s32.totalorder %s137, %s138
    %p149 = scmp.eq.s32.totalorder %s17, 0
    %p150 = por %p148, %p149
    %p151 = scmp.ne.s32.totalorder %s137, %s138
    %p152 = scmp.eq.s32.totalorder %s18, 1
    %p153 = por %p151, %p152
    %p155 = scmp.ne.s32.totalorder %s138, %s154
    %p156 = scmp.eq.s32.totalorder %s18, 0
    %p157 = por %p155, %p156
    %s158 = ssub.s32 %s19, %s31
    %s159 = ssub.s32 %s20, %s27
    %s160 = sor.u32 %s158, %s159
    %p161 = scmp.eq.s32.totalorder %s160, 0
    %s163 = sadd.s32 %s162, 1
    %s164 = scalar_select %p161, %s162, %s163
    %p167 = pneg %p161
    %p168 = scmp.eq.s32.totalorder %s12, 1
    %p169 = por %p167, %p168
    %p170 = scmp.ne.s32.totalorder %s162, %s165
    %p171 = scmp.eq.s32.totalorder %s12, 0
    %p172 = por %p170, %p171
    %p173 = scmp.ne.s32.totalorder %s162, %s165
    %p174 = scmp.eq.s32.totalorder %s17, 1
    %p175 = por %p173, %p174
    %p176 = scmp.ne.s32.totalorder %s165, %s166
    %p177 = scmp.eq.s32.totalorder %s17, 0
    %p178 = por %p176, %p177
    %p179 = scmp.ne.s32.totalorder %s165, %s166
    %p180 = scmp.eq.s32.totalorder %s18, 1
    %p181 = por %p179, %p180
    %p183 = scmp.ne.s32.totalorder %s166, %s182
    %p184 = scmp.eq.s32.totalorder %s18, 0
    %p185 = por %p183, %p184
    %p186 = scmp.le.s32.totalorder 1, %s12
    %p187 = scmp.lt.s32.totalorder %s12, 3
    %p188 = pnand %p186, %p187
    %p189 = pneg %p188
    // Predicated region
    $region9: #{downsample_forward.2} parent=5 // pred_check
      _
    $region10: #{downsample_forward.2} parent=5 // pred_check_branch
      %191 = sbr.rel (%p188) target = $region12
    $region11: #{downsample_forward.2} parent=5 // pred_region
      %s192 = ssub.s32 %s12, 1
      // Predicated region
      $region13: #{downsample_forward.2} parent=11 // pred_check
        %p193 = pneg %p73
      $region14: #{downsample_forward.2} parent=11 // pred_check_branch
        %195 = sbr.rel (%p193) target = $region16
      $region15: #{downsample_forward.2} parent=11 // pred_region
        _
      $region16: #{downsample_forward.2} parent=11 // pred_fallthru
        _
      // Predicated region
      $region17: #{downsample_forward.2} parent=11 // pred_check
        %p196 = pneg %p94
      $region18: #{downsample_forward.2} parent=11 // pred_check_branch
        %198 = sbr.rel (%p196) target = $region20
      $region19: #{downsample_forward.2} parent=11 // pred_region
        _
      $region20: #{downsample_forward.2} parent=11 // pred_fallthru
        _
    $region12: #{downsample_forward.2} parent=5 // pred_fallthru
      _
    %p199 = scmp.lt.s32.totalorder %s12, 2
    // Predicated region
    $region21: #{downsample_forward.2} parent=5 // pred_check
      %p200 = pneg %p199
    $region22: #{downsample_forward.2} parent=5 // pred_check_branch
      %202 = sbr.rel (%p200) target = $region24
    $region23: #{downsample_forward.2} parent=5 // pred_region
      // Predicated region
      $region25: #{downsample_forward.2} parent=23 // pred_check
        %p203 = pneg %p46
      $region26: #{downsample_forward.2} parent=23 // pred_check_branch
        %205 = sbr.rel (%p203) target = $region28
      $region27: #{downsample_forward.2} parent=23 // pred_region
        %s206 = smul.u32 16, %s20
        %p207 = scmp.lt.s32.totalorder %s19, 1
        %s208 = scalar_select %p207, %s19, 1
        %p209 = scmp.lt.s32.totalorder %s206, 15
        %s210 = scalar_select %p209, %s206, 15
        %s211 = smul.addr %s208, 16
        %s212 = sadd.s32 %s210, %s211
        %s213 = smul.addr %s212, 4
        %s214 = scalar_lea.vmem %s0, %s213
        %s215 = smul.u32 16, %s20
      $region28: #{downsample_forward.2} parent=23 // pred_fallthru
        _
    $region24: #{downsample_forward.2} parent=5 // pred_fallthru
      _
    %p216 = scmp.le.s32.totalorder 1, %s12
    %p217 = scmp.lt.s32.totalorder %s12, 3
    %p218 = pnand %p216, %p217
    %p219 = pneg %p218
    // Predicated region
    $region29: #{downsample_forward.2} parent=5 // pred_check
      _
    $region30: #{downsample_forward.2} parent=5 // pred_check_branch
      %221 = sbr.rel (%p218) target = $region32
    $region31: #{downsample_forward.2} parent=5 // pred_region
      %s222 = ssub.s32 %s12, 1
      %s223 = smul.u32 16, %s22
      %p224 = scmp.lt.s32.totalorder %s21, 1
      %s225 = scalar_select %p224, %s21, 1
      %p226 = scmp.lt.s32.totalorder %s223, 15
      %s227 = scalar_select %p226, %s223, 15
      %s228 = smul.addr %s225, 16
      %s229 = sadd.s32 %s227, %s228
      %s230 = smul.addr %s229, 4
      %s231 = scalar_lea.vmem %s0, %s230
      %p232 = pneg %p52
      %p233 = pneg %p49
      %p234 = pneg %p73
      %p235 = pneg %p70
      %p236 = pneg %p94
      %p237 = pneg %p91
      %p238 = pneg %p122
      %p239 = pneg %p119
      %s240 = smul.u32 16, %s22
      %p241 = scmp.lt.s32.totalorder %s21, 1
      %s242 = scalar_select %p241, %s21, 1
      %p243 = scmp.lt.s32.totalorder %s240, 15
      %s244 = scalar_select %p243, %s240, 15
      %s245 = smul.addr %s242, 16
      %s246 = sadd.s32 %s244, %s245
      %s247 = smul.addr %s246, 4
      %s248 = scalar_lea.vmem %s3, %s247
      %p249 = pneg %p150
      %p250 = pneg %p147
      %p251 = scmp.lt.s32.totalorder %s21, 1
      %s252 = scalar_select %p251, %s21, 1
      %p253 = scmp.lt.s32.totalorder %s22, 0
      %s254 = scalar_select %p253, %s22, 0
      %s255 = sadd.s32 %s254, %s252
      %s256 = scalar_lea.vmem %s4, %s255
      %p257 = pneg %p178
      %p258 = pneg %p175
      %p259 = scmp.lt.s32.totalorder %s21, 1
      %s260 = scalar_select %p259, %s21, 1
      %p261 = scmp.lt.s32.totalorder %s22, 0
      %s262 = scalar_select %p261, %s22, 0
      %s263 = sadd.s32 %s262, %s260
      %s264 = scalar_lea.vmem %s5, %s263
      %s265 = smul.u32 16, %s22
      %p266 = scmp.lt.s32.totalorder %s21, 1
      %s267 = scalar_select %p266, %s21, 1
      %p268 = scmp.lt.s32.totalorder %s265, 15
      %s269 = scalar_select %p268, %s265, 15
      %s270 = smul.addr %s267, 16
      %s271 = sadd.s32 %s269, %s270
      %s272 = smul.addr %s271, 4
      %s273 = scalar_lea.vmem %s0, %s272
      %s274 = smul.u32 16, %s22
      %s275 = smul.u32 16, %s22
      %p276 = scmp.lt.s32.totalorder %s21, 1
      %s277 = scalar_select %p276, %s21, 1
      %p278 = scmp.lt.s32.totalorder %s275, 15
      %s279 = scalar_select %p278, %s275, 15
      %s280 = smul.addr %s277, 16
      %s281 = sadd.s32 %s279, %s280
      %s282 = smul.addr %s281, 4
      %s283 = scalar_lea.vmem %s3, %s282
      %s284 = smul.u32 16, %s22
      %p285 = scmp.lt.s32.totalorder %s21, 1
      %s286 = scalar_select %p285, %s21, 1
      %p287 = scmp.lt.s32.totalorder %s22, 0
      %s288 = scalar_select %p287, %s22, 0
      %s289 = sadd.s32 %s288, %s286
      %s290 = scalar_lea.vmem %s4, %s289
      %p291 = scmp.lt.s32.totalorder %s21, 1
      %s292 = scalar_select %p291, %s21, 1
      %p293 = scmp.lt.s32.totalorder %s22, 0
      %s294 = scalar_select %p293, %s22, 0
      %s295 = sadd.s32 %s294, %s292
      %s296 = scalar_lea.vmem %s5, %s295
      %v297 = vld [vmem:[%s273] sm:$0xf]
      %v298 = vld [vmem:[%s273 + $0x4] sm:$0xf]
      %v299 = vld [vmem:[%s273 + $0x8] sm:$0xf]
      %v300 = vld [vmem:[%s273 + $0xc] sm:$0xf]
      %v301 = vld [vmem:[%s273 + $0x10] sm:$0xf]
      %v302 = vld [vmem:[%s273 + $0x14] sm:$0xf]
      %v303 = vld [vmem:[%s273 + $0x18] sm:$0xf]
      %v304 = vld [vmem:[%s273 + $0x1c] sm:$0xf]
      %v305 = vld [vmem:[%s273 + $0x20] sm:$0xf]
      %v306 = vld [vmem:[%s273 + $0x24] sm:$0xf]
      %v307 = vld [vmem:[%s273 + $0x28] sm:$0xf]
      %v308 = vld [vmem:[%s273 + $0x2c] sm:$0xf]
      %v309 = vld [vmem:[%s273 + $0x30] sm:$0xf]
      %v310 = vld [vmem:[%s273 + $0x34] sm:$0xf]
      %v311 = vld [vmem:[%s273 + $0x38] sm:$0xf]
      %v312 = vld [vmem:[%s273 + $0x3c] sm:$0xf]
      %v313 = vld [vmem:[%s1] sm:$0xf]
      %v314 = vld [vmem:[%s1 + $0x4] sm:$0xf]
      %v315 = vld [vmem:[%s1 + $0x8] sm:$0xf]
      %v316 = vld [vmem:[%s1 + $0xc] sm:$0xf]
      %v317 = vld [vmem:[%s1 + $0x10] sm:$0xf]
      %v318 = vld [vmem:[%s1 + $0x14] sm:$0xf]
      %v319 = vld [vmem:[%s1 + $0x18] sm:$0xf]
      %v320 = vld [vmem:[%s1 + $0x1c] sm:$0xf]
      %v321 = vld [vmem:[%s1 + $0x20] sm:$0xf]
      %v322 = vld [vmem:[%s1 + $0x24] sm:$0xf]
      %v323 = vld [vmem:[%s1 + $0x28] sm:$0xf]
      %v324 = vld [vmem:[%s1 + $0x2c] sm:$0xf]
      %v325 = vld [vmem:[%s1 + $0x30] sm:$0xf]
      %v326 = vld [vmem:[%s1 + $0x34] sm:$0xf]
      %v327 = vld [vmem:[%s1 + $0x38] sm:$0xf]
      %v328 = vld [vmem:[%s1 + $0x3c] sm:$0xf]
      %v329 = vld [vmem:[%s2] sm:$0x1]
      %v331 = vperm.slane %v329, 0
      %v349 = vunpack.c.l.b16 %v297
      %v350 = vunpack.c.l.b16 %v298
      %v351 = vunpack.c.l.b16 %v299
      %v352 = vunpack.c.l.b16 %v300
      %v353 = vunpack.c.l.b16 %v301
      %v354 = vunpack.c.l.b16 %v302
      %v355 = vunpack.c.l.b16 %v303
      %v356 = vunpack.c.l.b16 %v304
      %v357 = vunpack.c.l.b16 %v305
      %v358 = vunpack.c.l.b16 %v306
      %v359 = vunpack.c.l.b16 %v307
      %v360 = vunpack.c.l.b16 %v308
      %v361 = vunpack.c.l.b16 %v309
      %v362 = vunpack.c.l.b16 %v310
      %v363 = vunpack.c.l.b16 %v311
      %v364 = vunpack.c.l.b16 %v312
      %v365 = vpack.c.b16 %v350, %v349
      %v366 = vpack.c.b16 %v352, %v351
      %v367 = vpack.c.b16 %v354, %v353
      %v368 = vpack.c.b16 %v356, %v355
      %v369 = vpack.c.b16 %v358, %v357
      %v370 = vpack.c.b16 %v360, %v359
      %v371 = vpack.c.b16 %v362, %v361
      %v372 = vpack.c.b16 %v364, %v363
      %v397 = vunpack.c.l.b16 %v313
      %v398 = vunpack.c.l.b16 %v314
      %v399 = vunpack.c.l.b16 %v315
      %v400 = vunpack.c.l.b16 %v316
      %v401 = vunpack.c.l.b16 %v317
      %v402 = vunpack.c.l.b16 %v318
      %v403 = vunpack.c.l.b16 %v319
      %v404 = vunpack.c.l.b16 %v320
      %v405 = vunpack.c.l.b16 %v321
      %v406 = vunpack.c.l.b16 %v322
      %v407 = vunpack.c.l.b16 %v323
      %v408 = vunpack.c.l.b16 %v324
      %v409 = vunpack.c.l.b16 %v325
      %v410 = vunpack.c.l.b16 %v326
      %v411 = vunpack.c.l.b16 %v327
      %v412 = vunpack.c.l.b16 %v328
      %v413 = vpack.c.b16 %v398, %v397
      %v414 = vpack.c.b16 %v400, %v399
      %v415 = vpack.c.b16 %v402, %v401
      %v416 = vpack.c.b16 %v404, %v403
      %v417 = vpack.c.b16 %v406, %v405
      %v418 = vpack.c.b16 %v408, %v407
      %v419 = vpack.c.b16 %v410, %v409
      %v420 = vpack.c.b16 %v412, %v411
      %429 = vmatpush.bf16.msra.mxu0 %v420
      %430 = vmatpush.bf16.msra.mxu0 %v419
      %431 = vmatpush.bf16.msra.mxu0 %v418
      %432 = vmatpush.bf16.msra.mxu0 %v417
      %433 = vmatpush.bf16.msra.mxu0 %v416
      %434 = vmatpush.bf16.msra.mxu0 %v415
      %435 = vmatpush.bf16.msra.mxu0 %v414
      %436 = vmatpush.bf16.msra.mxu0 %v413
      %437 = vmatmul.bf16.gmra.mxu0 %v365
      %v438 = vpop.f32.mrf.mxu0
      %v439 = vadd.f32 %v331, %v438
      %v440 = vpop.f32.mrf.mxu0
      %v441 = vadd.f32 %v331, %v440
      %442 = vmatmul.bf16.gmra.mxu0 %v366
      %v443 = vpop.f32.mrf.mxu0
      %v444 = vadd.f32 %v331, %v443
      %v445 = vpop.f32.mrf.mxu0
      %v446 = vadd.f32 %v331, %v445
      %447 = vmatmul.bf16.gmra.mxu0 %v367
      %v448 = vpop.f32.mrf.mxu0
      %v449 = vadd.f32 %v331, %v448
      %v450 = vpop.f32.mrf.mxu0
      %v451 = vadd.f32 %v331, %v450
      %452 = vmatmul.bf16.gmra.mxu0 %v368
      %v453 = vpop.f32.mrf.mxu0
      %v454 = vadd.f32 %v331, %v453
      %v455 = vpop.f32.mrf.mxu0
      %v456 = vadd.f32 %v331, %v455
      %457 = vmatmul.bf16.gmra.mxu0 %v369
      %v458 = vpop.f32.mrf.mxu0
      %v459 = vadd.f32 %v331, %v458
      %v460 = vpop.f32.mrf.mxu0
      %v461 = vadd.f32 %v331, %v460
      %462 = vmatmul.bf16.gmra.mxu0 %v370
      %v463 = vpop.f32.mrf.mxu0
      %v464 = vadd.f32 %v331, %v463
      %v465 = vpop.f32.mrf.mxu0
      %v466 = vadd.f32 %v331, %v465
      %467 = vmatmul.bf16.gmra.mxu0 %v371
      %v468 = vpop.f32.mrf.mxu0
      %v469 = vadd.f32 %v331, %v468
      %v470 = vpop.f32.mrf.mxu0
      %v471 = vadd.f32 %v331, %v470
      %472 = vmatmul.bf16.gmra.mxu0 %v372
      %v473 = vpop.f32.mrf.mxu0
      %v474 = vadd.f32 %v331, %v473
      %v475 = vpop.f32.mrf.mxu0
      %v476 = vadd.f32 %v331, %v475
      %477 = vdwg.mxu0
      %v478 = vpack.c.bf16 %v439, %v439
      %v479 = vpack.c.bf16 %v441, %v441
      %v480 = vpack.c.bf16 %v444, %v444
      %v481 = vpack.c.bf16 %v446, %v446
      %v482 = vpack.c.bf16 %v449, %v449
      %v483 = vpack.c.bf16 %v451, %v451
      %v484 = vpack.c.bf16 %v454, %v454
      %v485 = vpack.c.bf16 %v456, %v456
      %v486 = vpack.c.bf16 %v459, %v459
      %v487 = vpack.c.bf16 %v461, %v461
      %v488 = vpack.c.bf16 %v464, %v464
      %v489 = vpack.c.bf16 %v466, %v466
      %v490 = vpack.c.bf16 %v469, %v469
      %v491 = vpack.c.bf16 %v471, %v471
      %v492 = vpack.c.bf16 %v474, %v474
      %v493 = vpack.c.bf16 %v476, %v476
      %494 = vst [vmem:[%s283] sm:$0xf] %v478
      %495 = vst [vmem:[%s283 + $0x4] sm:$0xf] %v479
      %496 = vst [vmem:[%s283 + $0x8] sm:$0xf] %v480
      %497 = vst [vmem:[%s283 + $0xc] sm:$0xf] %v481
      %498 = vst [vmem:[%s283 + $0x10] sm:$0xf] %v482
      %499 = vst [vmem:[%s283 + $0x14] sm:$0xf] %v483
      %500 = vst [vmem:[%s283 + $0x18] sm:$0xf] %v484
      %501 = vst [vmem:[%s283 + $0x1c] sm:$0xf] %v485
      %502 = vst [vmem:[%s283 + $0x20] sm:$0xf] %v486
      %503 = vst [vmem:[%s283 + $0x24] sm:$0xf] %v487
      %504 = vst [vmem:[%s283 + $0x28] sm:$0xf] %v488
      %505 = vst [vmem:[%s283 + $0x2c] sm:$0xf] %v489
      %506 = vst [vmem:[%s283 + $0x30] sm:$0xf] %v490
      %507 = vst [vmem:[%s283 + $0x34] sm:$0xf] %v491
      %508 = vst [vmem:[%s283 + $0x38] sm:$0xf] %v492
      %509 = vst [vmem:[%s283 + $0x3c] sm:$0xf] %v493
      %p510 = scmp.eq.s32.totalorder %s22, 0
      // Predicated region
      $region33: #{downsample_forward.2} parent=31 // pred_check
        %p511 = pneg %p510
      $region34: #{downsample_forward.2} parent=31 // pred_check_branch
        %513 = sbr.rel (%p511) target = $region36
      $region35: #{downsample_forward.2} parent=31 // pred_region
        %v514 = vlaneseq
        %v515 = vshrl.u32 %v514, 7
        %v516 = vadd.s32 %v515, 8
        %v517 = vadd.s32 %v515, 16
        %v518 = vadd.s32 %v515, 24
        %v519 = vadd.s32 %v515, 32
        %v520 = vadd.s32 %v515, 40
        %v521 = vadd.s32 %v515, 48
        %v522 = vadd.s32 %v515, 56
        %v523 = vadd.s32 %v515, 64
        %v524 = vadd.s32 %v515, 72
        %v525 = vadd.s32 %v515, 80
        %v526 = vadd.s32 %v515, 88
        %v527 = vadd.s32 %v515, 96
        %v528 = vadd.s32 %v515, 104
        %v529 = vadd.s32 %v515, 112
        %v530 = vadd.s32 %v515, 120
        %vm531 = vcmp.lt.s32.totalorder %v515, 64
        %vm532 = vcmp.lt.s32.totalorder %v516, 64
        %vm533 = vcmp.lt.s32.totalorder %v517, 64
        %vm534 = vcmp.lt.s32.totalorder %v518, 64
        %vm535 = vcmp.lt.s32.totalorder %v519, 64
        %vm536 = vcmp.lt.s32.totalorder %v520, 64
        %vm537 = vcmp.lt.s32.totalorder %v521, 64
        %vm538 = vcmp.lt.s32.totalorder %v522, 64
        %vm539 = vcmp.lt.s32.totalorder %v523, 64
        %vm540 = vcmp.lt.s32.totalorder %v524, 64
        %vm541 = vcmp.lt.s32.totalorder %v525, 64
        %vm542 = vcmp.lt.s32.totalorder %v526, 64
        %vm543 = vcmp.lt.s32.totalorder %v527, 64
        %vm544 = vcmp.lt.s32.totalorder %v528, 64
        %vm545 = vcmp.lt.s32.totalorder %v529, 64
        %vm546 = vcmp.lt.s32.totalorder %v530, 64
        %v547 = vsel %vm531, %v439, 0.0
        %v548 = vsel %vm532, %v441, 0.0
        %v549 = vsel %vm533, %v444, 0.0
        %v550 = vsel %vm534, %v446, 0.0
        %v551 = vsel %vm535, %v449, 0.0
        %v552 = vsel %vm536, %v451, 0.0
        %v553 = vsel %vm537, %v454, 0.0
        %v554 = vsel %vm538, %v456, 0.0
        %v555 = vsel %vm539, %v459, 0.0
        %v556 = vsel %vm540, %v461, 0.0
        %v557 = vsel %vm541, %v464, 0.0
        %v558 = vsel %vm542, %v466, 0.0
        %v559 = vsel %vm543, %v469, 0.0
        %v560 = vsel %vm544, %v471, 0.0
        %v561 = vsel %vm545, %v474, 0.0
        %v562 = vsel %vm546, %v476, 0.0
        %v563 = vadd.f32 %v547, %v548
        %v564 = vadd.f32 %v563, %v549
        %v565 = vadd.f32 %v564, %v550
        %v566 = vadd.f32 %v565, %v551
        %v567 = vadd.f32 %v566, %v552
        %v568 = vadd.f32 %v567, %v553
        %v569 = vadd.f32 %v568, %v554
        %v570 = vadd.f32 %v569, %v555
        %v571 = vadd.f32 %v570, %v556
        %v572 = vadd.f32 %v571, %v557
        %v573 = vadd.f32 %v572, %v558
        %v574 = vadd.f32 %v573, %v559
        %v575 = vadd.f32 %v574, %v560
        %v576 = vadd.f32 %v575, %v561
        %v577 = vadd.f32 %v576, %v562
        %v578 = vrot.slane %v577, 4
        %v579 = vadd.f32 %v577, %v578
        %v580 = vrot.slane %v579, 2
        %v581 = vadd.f32 %v579, %v580
        %v582 = vrot.slane %v581, 1
        %v583 = vadd.f32 %v581, %v582
        %584 = vst [vmem:[%s290] sm:$0x1] %v583
        %v585 = vmul.f32 %v547, %v547
        %v586 = vmul.f32 %v548, %v548
        %v587 = vmul.f32 %v549, %v549
        %v588 = vmul.f32 %v550, %v550
        %v589 = vmul.f32 %v551, %v551
        %v590 = vmul.f32 %v552, %v552
        %v591 = vmul.f32 %v553, %v553
        %v592 = vmul.f32 %v554, %v554
        %v593 = vmul.f32 %v555, %v555
        %v594 = vmul.f32 %v556, %v556
        %v595 = vmul.f32 %v557, %v557
        %v596 = vmul.f32 %v558, %v558
        %v597 = vmul.f32 %v559, %v559
        %v598 = vmul.f32 %v560, %v560
        %v599 = vmul.f32 %v561, %v561
        %v600 = vmul.f32 %v562, %v562
        %v601 = vadd.f32 %v585, %v586
        %v602 = vadd.f32 %v601, %v587
        %v603 = vadd.f32 %v602, %v588
        %v604 = vadd.f32 %v603, %v589
        %v605 = vadd.f32 %v604, %v590
        %v606 = vadd.f32 %v605, %v591
        %v607 = vadd.f32 %v606, %v592
        %v608 = vadd.f32 %v607, %v593
        %v609 = vadd.f32 %v608, %v594
        %v610 = vadd.f32 %v609, %v595
        %v611 = vadd.f32 %v610, %v596
        %v612 = vadd.f32 %v611, %v597
        %v613 = vadd.f32 %v612, %v598
        %v614 = vadd.f32 %v613, %v599
        %v615 = vadd.f32 %v614, %v600
        %v616 = vrot.slane %v615, 4
        %v617 = vadd.f32 %v615, %v616
        %v618 = vrot.slane %v617, 2
        %v619 = vadd.f32 %v617, %v618
        %v620 = vrot.slane %v619, 1
        %v621 = vadd.f32 %v619, %v620
        %622 = vst [vmem:[%s296] sm:$0x1] %v621
      $region36: #{downsample_forward.2} parent=31 // pred_fallthru
        _
      %p623 = scmp.ne.s32.totalorder %s22, 0
      // Predicated region
      $region37: #{downsample_forward.2} parent=31 // pred_check
        %p624 = pneg %p623
      $region38: #{downsample_forward.2} parent=31 // pred_check_branch
        %626 = sbr.rel (%p624) target = $region40
      $region39: #{downsample_forward.2} parent=31 // pred_region
        %v627 = vadd.f32 %v439, %v441
        %v628 = vadd.f32 %v627, %v444
        %v629 = vadd.f32 %v628, %v446
        %v630 = vadd.f32 %v629, %v449
        %v631 = vadd.f32 %v630, %v451
        %v632 = vadd.f32 %v631, %v454
        %v633 = vadd.f32 %v632, %v456
        %v634 = vadd.f32 %v633, %v459
        %v635 = vadd.f32 %v634, %v461
        %v636 = vadd.f32 %v635, %v464
        %v637 = vadd.f32 %v636, %v466
        %v638 = vadd.f32 %v637, %v469
        %v639 = vadd.f32 %v638, %v471
        %v640 = vadd.f32 %v639, %v474
        %v641 = vadd.f32 %v640, %v476
        %v642 = vrot.slane %v641, 4
        %v643 = vadd.f32 %v641, %v642
        %v644 = vrot.slane %v643, 2
        %v645 = vadd.f32 %v643, %v644
        %v646 = vrot.slane %v645, 1
        %v647 = vadd.f32 %v645, %v646
        %648 = vst [vmem:[%s290] sm:$0x1] %v647
        %v649 = vmul.f32 %v439, %v439
        %v650 = vmul.f32 %v441, %v441
        %v651 = vmul.f32 %v444, %v444
        %v652 = vmul.f32 %v446, %v446
        %v653 = vmul.f32 %v449, %v449
        %v654 = vmul.f32 %v451, %v451
        %v655 = vmul.f32 %v454, %v454
        %v656 = vmul.f32 %v456, %v456
        %v657 = vmul.f32 %v459, %v459
        %v658 = vmul.f32 %v461, %v461
        %v659 = vmul.f32 %v464, %v464
        %v660 = vmul.f32 %v466, %v466
        %v661 = vmul.f32 %v469, %v469
        %v662 = vmul.f32 %v471, %v471
        %v663 = vmul.f32 %v474, %v474
        %v664 = vmul.f32 %v476, %v476
        %v665 = vadd.f32 %v649, %v650
        %v666 = vadd.f32 %v665, %v651
        %v667 = vadd.f32 %v666, %v652
        %v668 = vadd.f32 %v667, %v653
        %v669 = vadd.f32 %v668, %v654
        %v670 = vadd.f32 %v669, %v655
        %v671 = vadd.f32 %v670, %v656
        %v672 = vadd.f32 %v671, %v657
        %v673 = vadd.f32 %v672, %v658
        %v674 = vadd.f32 %v673, %v659
        %v675 = vadd.f32 %v674, %v660
        %v676 = vadd.f32 %v675, %v661
        %v677 = vadd.f32 %v676, %v662
        %v678 = vadd.f32 %v677, %v663
        %v679 = vadd.f32 %v678, %v664
        %v680 = vrot.slane %v679, 4
        %v681 = vadd.f32 %v679, %v680
        %v682 = vrot.slane %v681, 2
        %v683 = vadd.f32 %v681, %v682
        %v684 = vrot.slane %v683, 1
        %v685 = vadd.f32 %v683, %v684
        %686 = vst [vmem:[%s296] sm:$0x1] %v685
      $region40: #{downsample_forward.2} parent=31 // pred_fallthru
        _
      %s687 = smul.u32 16, %s22
      %p688 = scmp.lt.s32.totalorder %s21, 1
      %s689 = scalar_select %p688, %s21, 1
      %p690 = scmp.lt.s32.totalorder %s687, 15
      %s691 = scalar_select %p690, %s687, 15
      %s692 = smul.addr %s689, 16
      %s693 = sadd.s32 %s691, %s692
      %s694 = smul.addr %s693, 4
      %s695 = scalar_lea.vmem %s3, %s694
      %p696 = scmp.lt.s32.totalorder %s21, 1
      %s697 = scalar_select %p696, %s21, 1
      %p698 = scmp.lt.s32.totalorder %s22, 0
      %s699 = scalar_select %p698, %s22, 0
      %s700 = sadd.s32 %s699, %s697
      %s701 = scalar_lea.vmem %s4, %s700
      %p702 = scmp.lt.s32.totalorder %s21, 1
      %s703 = scalar_select %p702, %s21, 1
      %p704 = scmp.lt.s32.totalorder %s22, 0
      %s705 = scalar_select %p704, %s22, 0
      %s706 = sadd.s32 %s705, %s703
      %s707 = scalar_lea.vmem %s5, %s706
      // Predicated region
      $region41: #{downsample_forward.2} parent=31 // pred_check
        %p708 = pneg %p119
      $region42: #{downsample_forward.2} parent=31 // pred_check_branch
        %710 = sbr.rel (%p708) target = $region44
      $region43: #{downsample_forward.2} parent=31 // pred_region
        %s711 = smul.u32 16, %s22
      $region44: #{downsample_forward.2} parent=31 // pred_fallthru
        _
      // Predicated region
      $region45: #{downsample_forward.2} parent=31 // pred_check
        %p712 = pneg %p147
      $region46: #{downsample_forward.2} parent=31 // pred_check_branch
        %714 = sbr.rel (%p712) target = $region48
      $region47: #{downsample_forward.2} parent=31 // pred_region
        _
      $region48: #{downsample_forward.2} parent=31 // pred_fallthru
        _
      // Predicated region
      $region49: #{downsample_forward.2} parent=31 // pred_check
        %p715 = pneg %p175
      $region50: #{downsample_forward.2} parent=31 // pred_check_branch
        %717 = sbr.rel (%p715) target = $region52
      $region51: #{downsample_forward.2} parent=31 // pred_region
        _
      $region52: #{downsample_forward.2} parent=31 // pred_fallthru
        _
    $region32: #{downsample_forward.2} parent=5 // pred_fallthru
      _
    %p718 = scmp.le.s32.totalorder 2, %s12
    // Predicated region
    $region53: #{downsample_forward.2} parent=5 // pred_check
      %p719 = pneg %p718
    $region54: #{downsample_forward.2} parent=5 // pred_check_branch
      %721 = sbr.rel (%p719) target = $region56
    $region55: #{downsample_forward.2} parent=5 // pred_region
      %s722 = ssub.s32 %s12, 2
      // Predicated region
      $region57: #{downsample_forward.2} parent=55 // pred_check
        %p723 = pneg %p125
      $region58: #{downsample_forward.2} parent=55 // pred_check_branch
        %725 = sbr.rel (%p723) target = $region60
      $region59: #{downsample_forward.2} parent=55 // pred_region
        %s726 = smul.u32 16, %s24
        %p727 = scmp.lt.s32.totalorder %s23, 1
        %s728 = scalar_select %p727, %s23, 1
        %p729 = scmp.lt.s32.totalorder %s726, 15
        %s730 = scalar_select %p729, %s726, 15
        %s731 = smul.addr %s728, 16
        %s732 = sadd.s32 %s730, %s731
        %s733 = smul.addr %s732, 4
        %s734 = scalar_lea.vmem %s3, %s733
      $region60: #{downsample_forward.2} parent=55 // pred_fallthru
        _
      // Predicated region
      $region61: #{downsample_forward.2} parent=55 // pred_check
        %p735 = pneg %p153
      $region62: #{downsample_forward.2} parent=55 // pred_check_branch
        %737 = sbr.rel (%p735) target = $region64
      $region63: #{downsample_forward.2} parent=55 // pred_region
        %p738 = scmp.lt.s32.totalorder %s23, 1
        %s739 = scalar_select %p738, %s23, 1
        %p740 = scmp.lt.s32.totalorder %s24, 0
        %s741 = scalar_select %p740, %s24, 0
        %s742 = sadd.s32 %s741, %s739
        %s743 = scalar_lea.vmem %s4, %s742
      $region64: #{downsample_forward.2} parent=55 // pred_fallthru
        _
      // Predicated region
      $region65: #{downsample_forward.2} parent=55 // pred_check
        %p744 = pneg %p181
      $region66: #{downsample_forward.2} parent=55 // pred_check_branch
        %746 = sbr.rel (%p744) target = $region68
      $region67: #{downsample_forward.2} parent=55 // pred_region
        %p747 = scmp.lt.s32.totalorder %s23, 1
        %s748 = scalar_select %p747, %s23, 1
        %p749 = scmp.lt.s32.totalorder %s24, 0
        %s750 = scalar_select %p749, %s24, 0
        %s751 = sadd.s32 %s750, %s748
        %s752 = scalar_lea.vmem %s5, %s751
      $region68: #{downsample_forward.2} parent=55 // pred_fallthru
        _
    $region56: #{downsample_forward.2} parent=5 // pred_fallthru
      _
  $region6: #{downsample_forward.2} parent=0 // loop_footer
    %s16 = sadd.s32 1, %s12
  $region7: #{downsample_forward.2} parent=0 // loop_footer_branch
    %11 = sbr.rel target = $region3
  $region8: #{downsample_forward.2} parent=0 // loop_exit
    _

</llo_original>
